<compile_context>
chip_gen: v6e
topology: v6e:2x2x1
jax: 0.10.0
libtpu: 0.0.40
codegen_flags: <defaults>
</compile_context>

<pallas_src>
import functools

import jax
import jax.numpy as jnp
from jax.experimental import pallas as pl
from jax.experimental.pallas import tpu as pltpu


def _round_up(x: int, m: int) -> int:
    return (x + m - 1) // m * m


def _joints3d_loss_kernel(pred_ref, gt_ref, out_ref, acc_ref):
    """One (3, tm, 128) tile of the lane-dense joint layout.

    pred_ref, gt_ref: (3, tm, 128) VMEM blocks (plane 0/1/2 = u/v/d,
                      sublanes = joint rows, lanes = joints within a row)
    out_ref:          (1, 1, 128) VMEM per-core partial-sum output block
    acc_ref:          (tm, 128) f32 VMEM accumulator (persists across the
                      inner 'arbitrary' reduction axis)
    """
    i = pl.program_id(1)  # inner reduction axis (this core's tile index)

    @pl.when(i == 0)
    def _():
        acc_ref[...] = jnp.zeros_like(acc_ref)

    diff = gt_ref[...].astype(jnp.float32) - pred_ref[...].astype(jnp.float32)
    d0 = diff[0]                     # dense (tm, 128) slabs -> pure VPU work
    d1 = diff[1]
    d2 = diff[2]
    sq = d0 * d0 + d1 * d1 + d2 * d2
    # Forward pass only; sqrt has an undefined gradient at exactly zero —
    # guard with +eps before ever defining a VJP for this kernel.
    acc_ref[...] += jnp.sqrt(sq)     # EUP; zero-padded joints contribute 0.

    @pl.when(i == pl.num_programs(1) - 1)
    def _():
        # Single sublane (XLU) reduce per core; the final cross-lane sum and
        # the /num_joints happen on the tiny (nc, 1, 128) result in the
        # wrapper (fuses under the caller's jit).
        out_ref[...] = jnp.sum(
            acc_ref[...], axis=0, keepdims=True).reshape(1, 1, 128)


def _jnp_joints3d_loss(pose3d_pred, pose3d_gt):
    """Pure-jnp reference / small-batch fast path."""
    diff = pose3d_gt.astype(jnp.float32) - pose3d_pred.astype(jnp.float32)
    return jnp.sum(jnp.sqrt(jnp.sum(diff * diff, axis=2))) / pose3d_pred.shape[1]


@functools.partial(
    jax.jit,
    static_argnames=("tile_m", "num_cores", "jnp_fastpath_max_elems"))
def joints3d_mse_loss(pose3d_pred, pose3d_gt, *, tile_m: int = 2048,
                      num_cores: int = 2, jnp_fastpath_max_elems: int = 0):
    """pose3d_pred, pose3d_gt: (B, 21, 3) [u, v, d] -> scalar float32 loss."""
    assert pose3d_pred.shape == pose3d_gt.shape
    B, J, C = pose3d_pred.shape
    assert C == 3
    n = B * J

    # Tiny problems are pallas_call-launch-overhead bound; optionally stay in
    # plain XLA (e.g. set jnp_fastpath_max_elems=4096 in production).
    if n <= jnp_fastpath_max_elems:
        return _jnp_joints3d_loss(pose3d_pred, pose3d_gt)

    # --- static tiling ------------------------------------------------------
    M = pl.cdiv(n, 128)                        # rows of 128 joints
    nc = max(1, min(num_cores, M // 8))        # parallel (TensorCore) axis
    rows_per_core = pl.cdiv(M, nc)
    T = pl.cdiv(rows_per_core, tile_m)         # reduction steps per core
    tm = _round_up(pl.cdiv(rows_per_core, T), 8)
    m_pad = nc * T * tm                        # rows after zero padding

    # --- lane-dense relayout: (B, J, 3) -> (3, m_pad, 128) -------------------
    # Under jit the transpose + pad + reshape fuse into a single copy pass.
    # TODO(synk): in production, accept the (3, M, 128) layout directly from
    # the upstream producer so this relayout pass disappears entirely.
    def relayout(x):
        flat = x.reshape(n, C).T               # (3, n): joints on the lane axis
        flat = jnp.pad(flat, ((0, 0), (0, m_pad * 128 - n)))
        return flat.reshape(C, m_pad, 128)

    pred3 = relayout(pose3d_pred)
    gt3 = relayout(pose3d_gt)

    in_spec = pl.BlockSpec((C, tm, 128), lambda c, i: (0, c * T + i, 0))

    partials = pl.pallas_call(
        _joints3d_loss_kernel,
        out_shape=jax.ShapeDtypeStruct((nc, 1, 128), jnp.float32),
        grid=(nc, T),
        in_specs=[in_spec, in_spec],
        out_specs=pl.BlockSpec((1, 1, 128), lambda c, i: (c, 0, 0)),
        scratch_shapes=[pltpu.VMEM((tm, 128), jnp.float32)],
        compiler_params=pltpu.CompilerParams(
            dimension_semantics=("parallel", "arbitrary"),
            vmem_limit_bytes=32 * 1024 * 1024),
        cost_estimate=pl.CostEstimate(
            flops=9 * n, transcendentals=n, bytes_accessed=2 * n * C * 4),
    )(pred3, gt3)

    return jnp.sum(partials) / jnp.float32(J)


if __name__ == "__main__":
    key = jax.random.PRNGKey(0)
    k1, k2, k3, k4 = jax.random.split(key, 4)

    # Nominal module shape: batch=2, 21 joints, [u, v, d].
    B, J, C = 2, 21, 3
    pred = jax.random.normal(k1, (B, J, C), dtype=jnp.float32)
    gt = jax.random.normal(k2, (B, J, C), dtype=jnp.float32)
    loss = joints3d_mse_loss(pred, gt)          # fast path disabled -> kernel
    jax.block_until_ready(loss)
    ref = _jnp_joints3d_loss(pred, gt)
    assert jnp.allclose(loss, ref, rtol=1e-5, atol=1e-5), (loss, ref)

    # Larger batch: exercises the 2-way parallel core axis and a multi-step
    # inner reduction axis (grid = (2, 3) with the small tile_m below).
    B2 = 4096
    p2 = jax.random.normal(k3, (B2, J, C), dtype=jnp.float32)
    g2 = jax.random.normal(k4, (B2, J, C), dtype=jnp.float32)
    loss2 = joints3d_mse_loss(p2, g2, tile_m=128)
    jax.block_until_ready(loss2)
    ref2 = _jnp_joints3d_loss(p2, g2)
    assert jnp.allclose(loss2, ref2, rtol=1e-4, atol=1e-4), (loss2, ref2)

    print("KERNEL_OK")
</pallas_src>

<mosaic_0001>
module attributes {stable_mosaic.version = 11 : i64} {
  func.func @_joints3d_loss_kernel(%arg0: i32, %arg1: i32, %arg2: memref<3x8x128xf32, #tpu.memory_space<vmem>>, %arg3: memref<3x8x128xf32, #tpu.memory_space<vmem>>, %arg4: memref<1x1x128xf32, #tpu.memory_space<vmem>>, %arg5: memref<8x128xf32, #tpu.memory_space<vmem>>) attributes {dimension_semantics = [#tpu.dimension_semantics<parallel>, #tpu.dimension_semantics<arbitrary>], iteration_bounds = array<i64: 1, 1>, scalar_prefetch = 0 : i64, scratch_operands = 1 : i64, tpu.core_type = #tpu.core_type<tc>, window_params = [{transform_indices = @transform_0, window_bounds = array<i64: 3, 8, 128>}, {transform_indices = @transform_1, window_bounds = array<i64: 3, 8, 128>}, {transform_indices = @transform_2, window_bounds = array<i64: 1, 1, 128>}]} {
    %c0_i32 = arith.constant 0 : i32
    %0 = arith.cmpi eq, %arg1, %c0_i32 : i32
    %1 = arith.extui %0 : i1 to i32
    %c0_i32_0 = arith.constant 0 : i32
    %2 = arith.cmpi ne, %1, %c0_i32_0 : i32
    scf.if %2 {
      %cst = arith.constant 0.000000e+00 : f32
      %24 = vector.broadcast %cst : f32 to vector<8x128xf32>
      %c0_12 = arith.constant 0 : index
      %c0_13 = arith.constant 0 : index
      %25 = vector.load %arg5[%c0_12, %c0_13] : memref<8x128xf32, #tpu.memory_space<vmem>>, vector<8x128xf32>
      tpu.vector_store %arg5[%c0_12, %c0_13], %24 {strides = array<i32>} : memref<8x128xf32, #tpu.memory_space<vmem>>, vector<8x128xf32>,
    } else {
    }
    %c0 = arith.constant 0 : index
    %c0_1 = arith.constant 0 : index
    %c0_2 = arith.constant 0 : index
    %3 = vector.load %arg3[%c0, %c0_1, %c0_2] : memref<3x8x128xf32, #tpu.memory_space<vmem>>, vector<3x8x128xf32>
    %c0_3 = arith.constant 0 : index
    %c0_4 = arith.constant 0 : index
    %c0_5 = arith.constant 0 : index
    %4 = vector.load %arg2[%c0_3, %c0_4, %c0_5] : memref<3x8x128xf32, #tpu.memory_space<vmem>>, vector<3x8x128xf32>
    %5 = arith.subf %3, %4 : vector<3x8x128xf32>
    %6 = vector.extract_strided_slice %5 {offsets = [0, 0, 0], sizes = [1, 8, 128], strides = [1, 1, 1]} : vector<3x8x128xf32> to vector<1x8x128xf32>
    %7 = vector.shape_cast %6 : vector<1x8x128xf32> to vector<8x128xf32>
    %8 = vector.extract_strided_slice %5 {offsets = [1, 0, 0], sizes = [1, 8, 128], strides = [1, 1, 1]} : vector<3x8x128xf32> to vector<1x8x128xf32>
    %9 = vector.shape_cast %8 : vector<1x8x128xf32> to vector<8x128xf32>
    %10 = vector.extract_strided_slice %5 {offsets = [2, 0, 0], sizes = [1, 8, 128], strides = [1, 1, 1]} : vector<3x8x128xf32> to vector<1x8x128xf32>
    %11 = vector.shape_cast %10 : vector<1x8x128xf32> to vector<8x128xf32>
    %12 = arith.mulf %7, %7 : vector<8x128xf32>
    %13 = arith.mulf %9, %9 : vector<8x128xf32>
    %14 = arith.addf %12, %13 : vector<8x128xf32>
    %15 = arith.mulf %11, %11 : vector<8x128xf32>
    %16 = arith.addf %14, %15 : vector<8x128xf32>
    %c0_6 = arith.constant 0 : index
    %c0_7 = arith.constant 0 : index
    %17 = vector.load %arg5[%c0_6, %c0_7] : memref<8x128xf32, #tpu.memory_space<vmem>>, vector<8x128xf32>
    %18 = math.sqrt %16 : vector<8x128xf32>
    %19 = arith.addf %17, %18 : vector<8x128xf32>
    %c0_8 = arith.constant 0 : index
    %c0_9 = arith.constant 0 : index
    %20 = vector.load %arg5[%c0_8, %c0_9] : memref<8x128xf32, #tpu.memory_space<vmem>>, vector<8x128xf32>
    tpu.vector_store %arg5[%c0_8, %c0_9], %19 {strides = array<i32>} : memref<8x128xf32, #tpu.memory_space<vmem>>, vector<8x128xf32>,
    %c0_i32_10 = arith.constant 0 : i32
    %21 = arith.cmpi eq, %arg1, %c0_i32_10 : i32
    %22 = arith.extui %21 : i1 to i32
    %c0_i32_11 = arith.constant 0 : i32
    %23 = arith.cmpi ne, %22, %c0_i32_11 : i32
    scf.if %23 {
      %c0_12 = arith.constant 0 : index
      %c0_13 = arith.constant 0 : index
      %24 = vector.load %arg5[%c0_12, %c0_13] : memref<8x128xf32, #tpu.memory_space<vmem>>, vector<8x128xf32>
      %cst = arith.constant dense<0.000000e+00> : vector<128xf32>
      %25 = vector.multi_reduction <add>, %24, %cst [0] : vector<8x128xf32> to vector<128xf32>
      %26 = vector.shape_cast %25 : vector<128xf32> to vector<1x128xf32>
      %27 = vector.shape_cast %26 : vector<1x128xf32> to vector<1x1x128xf32>
      %c0_14 = arith.constant 0 : index
      %c0_15 = arith.constant 0 : index
      %c0_16 = arith.constant 0 : index
      %28 = vector.load %arg4[%c0_14, %c0_15, %c0_16] : memref<1x1x128xf32, #tpu.memory_space<vmem>>, vector<1x1x128xf32>
      tpu.vector_store %arg4[%c0_14, %c0_15, %c0_16], %27 {strides = array<i32>} : memref<1x1x128xf32, #tpu.memory_space<vmem>>, vector<1x1x128xf32>,
    } else {
    }
    return
  }
  func.func @transform_0(%arg0: i32, %arg1: i32) -> (i32, i32, i32) {
    %c1_i32 = arith.constant 1 : i32
    %0 = arith.muli %arg0, %c1_i32 : i32
    %1 = arith.addi %0, %arg1 : i32
    %c0_i32 = arith.constant 0 : i32
    %c0_i32_0 = arith.constant 0 : i32
    %c0_i32_1 = arith.constant 0 : i32
    return %c0_i32, %1, %c0_i32_0 : i32, i32, i32
  }
  func.func @transform_1(%arg0: i32, %arg1: i32) -> (i32, i32, i32) {
    %c1_i32 = arith.constant 1 : i32
    %0 = arith.muli %arg0, %c1_i32 : i32
    %1 = arith.addi %0, %arg1 : i32
    %c0_i32 = arith.constant 0 : i32
    %c0_i32_0 = arith.constant 0 : i32
    %c0_i32_1 = arith.constant 0 : i32
    return %c0_i32, %1, %c0_i32_0 : i32, i32, i32
  }
  func.func @transform_2(%arg0: i32, %arg1: i32) -> (i32, i32, i32) {
    %c0_i32 = arith.constant 0 : i32
    %c0_i32_0 = arith.constant 0 : i32
    %c0_i32_1 = arith.constant 0 : i32
    return %arg0, %c0_i32, %c0_i32_0 : i32, i32, i32
  }
}

</mosaic_0001>

<llo_original>
// kernel: joints3d_mse_loss.1
$region0: #{joints3d_mse_loss.1}
  #allocation0 [shape = 'u32[]', space=smem, size = 0x4, offset = 0x4, fixed_abs, tag = 'smem constant byte address 0x4 - core index']
  #allocation1 [shape = 'u32[144,128]{1,0:T(1,128)}', space=vmem, size = 0x12000, scoped, tag = 'internal scratch']
  #allocation2 [shape = 'f32[8,128]{1,0:T(8,128)}', space=vmem, size = 0x1000, scoped, tag = 'scratch operand']
  %s0 = inlined_call_operand.vmem [shape: f32[3,8,128], index: 0, kind: input, shape index: {}]
  %s1 = inlined_call_operand.vmem [shape: f32[3,8,128], index: 1, kind: input, shape index: {}]
  %s2 = inlined_call_operand.vmem [shape: f32[1,1,128], index: 2, kind: output, shape index: {}]
  %s3 = sld [smem:[#allocation0]]
  $region26: #{joints3d_mse_loss.1} parent=0
    _
  %s5 = ssub.s32 1, %s3
  %s6 = scalar_select 0, %s5, %s3
  // Predicated region
  $region2: #{joints3d_mse_loss.1} parent=0 // pred_check
    _
  $region3: #{joints3d_mse_loss.1} parent=0 // pred_check_branch
    %8 = sbr.rel (0) target = $region5
  $region4: #{joints3d_mse_loss.1} parent=0 // pred_region
    %s9 = sadd.s32 0, 0
    %p10 = scmp.lt.s32.totalorder %s9, 0
    %s11 = scalar_select %p10, %s9, 0
    %s12 = smul.addr %s11, 8
    %s13 = scalar_lea.vmem %s0, %s12
    %s14 = sadd.s32 0, 0
  $region5: #{joints3d_mse_loss.1} parent=0 // pred_fallthru
    _
  // Predicated region
  $region6: #{joints3d_mse_loss.1} parent=0 // pred_check
    _
  $region7: #{joints3d_mse_loss.1} parent=0 // pred_check_branch
    %16 = sbr.rel (0) target = $region9
  $region8: #{joints3d_mse_loss.1} parent=0 // pred_region
    %s17 = sadd.s32 0, 0
    %p18 = scmp.lt.s32.totalorder %s17, 0
    %s19 = scalar_select %p18, %s17, 0
    %s20 = smul.addr %s19, 8
    %s21 = scalar_lea.vmem %s1, %s20
    %s22 = sadd.s32 0, 0
  $region9: #{joints3d_mse_loss.1} parent=0 // pred_fallthru
    _
  %s23 = sadd.s32 0, 0
  %p24 = scmp.lt.s32.totalorder %s23, 0
  %s25 = scalar_select %p24, %s23, 0
  %s26 = smul.addr %s25, 8
  %s27 = scalar_lea.vmem %s0, %s26
  %s28 = sadd.s32 0, 0
  %p29 = scmp.lt.s32.totalorder %s28, 0
  %s30 = scalar_select %p29, %s28, 0
  %s31 = smul.addr %s30, 8
  %s32 = scalar_lea.vmem %s1, %s31
  %s33 = sadd.s32 0, 0
  %p34 = scmp.lt.s32.totalorder %s33, 0
  %s35 = scalar_select %p34, %s33, 0
  %s36 = smul.addr %s35, 8
  %s37 = scalar_lea.vmem %s0, %s36
  %s38 = sadd.s32 0, 0
  %s39 = sadd.s32 0, 0
  %p40 = scmp.lt.s32.totalorder %s39, 0
  %s41 = scalar_select %p40, %s39, 0
  %s42 = smul.addr %s41, 8
  %s43 = scalar_lea.vmem %s1, %s42
  %s44 = sadd.s32 0, 0
  %p45 = scmp.eq.s32.totalorder 0, 0
  // Predicated region
  $region10: #{joints3d_mse_loss.1} parent=0 // pred_check
    %p46 = pneg %p45
  $region11: #{joints3d_mse_loss.1} parent=0 // pred_check_branch
    %48 = sbr.rel (%p46) target = $region13
  $region12: #{joints3d_mse_loss.1} parent=0 // pred_region
    %49 = vst [vmem:[#allocation2] sm:$0xff] 0.0
  $region13: #{joints3d_mse_loss.1} parent=0 // pred_fallthru
    _
  %v50 = vld [vmem:[%s43] sm:$0xff]
  %v51 = vld [vmem:[%s43 + $0x8] sm:$0xff]
  %v52 = vld [vmem:[%s43 + $0x10] sm:$0xff]
  %v53 = vld [vmem:[%s37] sm:$0xff]
  %v54 = vld [vmem:[%s37 + $0x8] sm:$0xff]
  %v55 = vld [vmem:[%s37 + $0x10] sm:$0xff]
  %v56 = vsub.f32 %v50, %v53
  %v57 = vsub.f32 %v51, %v54
  %v58 = vsub.f32 %v52, %v55
  %v59 = vmul.f32 %v56, %v56
  %v60 = vmul.f32 %v57, %v57
  %v61 = vadd.f32 %v59, %v60
  %v62 = vmul.f32 %v58, %v58
  %v63 = vadd.f32 %v61, %v62
  %v64 = vld [vmem:[#allocation2] sm:$0xff]
  %v65 = vrsqrt.pop %v63
  %v66 = vmul.f32 %v63, %v65
  %vm67 = vcmp.eq.f32.partialorder %v63, inf
  %v68 = vsel %vm67, %v63, %v66
  %vm69 = vcmp.eq.f32.partialorder %v63, 0.0
  %v70 = vand.u32 %v63, 2147483648
  %v71 = vsel %vm69, %v70, %v68
  %v72 = vadd.f32 %v64, %v71
  %73 = vst [vmem:[#allocation2] sm:$0xff] %v72
  // Predicated region
  $region14: #{joints3d_mse_loss.1} parent=0 // pred_check
    %p74 = pneg %p45
  $region15: #{joints3d_mse_loss.1} parent=0 // pred_check_branch
    %76 = sbr.rel (%p74) target = $region17
  $region16: #{joints3d_mse_loss.1} parent=0 // pred_region
    %v77 = vld [vmem:[#allocation2] sm:$0xff]
    %v78 = vrot.slane %v77, 4
    %v79 = vadd.f32 %v77, %v78
    %v80 = vrot.slane %v79, 2
    %v81 = vadd.f32 %v79, %v80
    %v82 = vrot.slane %v81, 1
    %v83 = vadd.f32 %v81, %v82
    %84 = vst [vmem:[%s2] sm:$0x1] %v83
  $region17: #{joints3d_mse_loss.1} parent=0 // pred_fallthru
    _
  // Predicated region
  $region18: #{joints3d_mse_loss.1} parent=0 // pred_check
    _
  $region19: #{joints3d_mse_loss.1} parent=0 // pred_check_branch
    %86 = sbr.rel (0) target = $region21
  $region20: #{joints3d_mse_loss.1} parent=0 // pred_region
    _
  $region21: #{joints3d_mse_loss.1} parent=0 // pred_fallthru
    _
  // Predicated region
  $region22: #{joints3d_mse_loss.1} parent=0 // pred_check
    _
  $region23: #{joints3d_mse_loss.1} parent=0 // pred_check_branch
    %88 = sbr.rel (0) target = $region25
  $region24: #{joints3d_mse_loss.1} parent=0 // pred_region
    _
  $region25: #{joints3d_mse_loss.1} parent=0 // pred_fallthru
    _

</llo_original>
